<compile_context>
chip_gen: v5e
topology: v5e:2x2
jax: 0.10.0
libtpu: 0.0.40
codegen_flags: <defaults>
</compile_context>

<pallas_src>
import functools

import jax
import jax.numpy as jnp
from jax import lax
from jax.experimental import pallas as pl
from jax.experimental.pallas import tpu as pltpu

KERNEL_SIZE = 7
PAD = 3
BN_EPS = 1e-5
LANE = 128          # lane width: channel padding target
HALO_BLK = 8        # sublane-aligned halo block (multiple of 8, >= PAD)


def _round_up(x, m):
    return (x + m - 1) // m * m


# --------------------------------------------------------------------------
# Pass 1: 7-tap conv (single im2col matmul) + per-tile partial BN statistics
# --------------------------------------------------------------------------
def _conv_stats_kernel(xp_ref, xc_ref, xn_ref, w_ref, conv_ref, stats_ref, *,
                       n_l_tiles, l_tile, l_valid, mxu_dtype):
    # xp_ref : (1, 8, C_in_p)        8 rows ending where this tile starts (prev halo)
    # xc_ref : (1, L_t, C_in_p)      current L tile
    # xn_ref : (1, 8, C_in_p)        8 rows starting where this tile ends (next halo)
    # w_ref  : (7*C_in_p, C_out_p)   tap-major stacked conv weights
    # conv_ref : (1, L_t, C_out_p)   conv output tile (f32)
    # stats_ref: (1, 1, 2, C_out_p)  per-tile [sum, sum_of_squares] per channel
    j = pl.program_id(1)

    # Halo rows; zeroed at the sequence boundaries -> implements padding=3.
    left = xp_ref[0, HALO_BLK - PAD:, :]              # (PAD, C_in_p)
    left = jnp.where(j == 0, 0.0, left)
    right = xn_ref[0, :PAD, :]                        # (PAD, C_in_p)
    right = jnp.where(j == n_l_tiles - 1, 0.0, right)

    win = jnp.concatenate([left, xc_ref[0], right], axis=0)   # (L_t + 6, C_in_p)

    # im2col over the 7 taps -> one contraction-dense MXU matmul per tile.
    cols = jnp.concatenate(
        [win[k:k + l_tile, :] for k in range(KERNEL_SIZE)], axis=1)  # (L_t, 7*C_in_p)
    acc = jnp.dot(cols.astype(mxu_dtype), w_ref[...],
                  preferred_element_type=jnp.float32)                # (L_t, C_out_p)

    conv_ref[0] = acc.astype(conv_ref.dtype)

    # One-pass partial stats (sum, sum of squares); mask rows beyond the real L
    # so length padding never pollutes the global BN statistics.
    row = j * l_tile + lax.broadcasted_iota(jnp.int32, (l_tile, 1), 0)
    accm = jnp.where(row < l_valid, acc, 0.0)
    s = jnp.sum(accm, axis=0, keepdims=True)          # (1, C_out_p)
    sq = jnp.sum(accm * accm, axis=0, keepdims=True)  # (1, C_out_p)
    stats_ref[0, 0] = jnp.concatenate([s, sq], axis=0)


# --------------------------------------------------------------------------
# Pass 2: y = relu(conv * scale + shift)   (scale/shift fold BN mean/var/gamma/beta)
# --------------------------------------------------------------------------
def _bn_relu_kernel(conv_ref, scale_ref, shift_ref, o_ref):
    y = conv_ref[0] * scale_ref[0] + shift_ref[0]
    o_ref[0] = jnp.maximum(y, 0.0).astype(o_ref.dtype)


# --------------------------------------------------------------------------
# Wrapper
# --------------------------------------------------------------------------
def conv7_forward(x_ncl, w, b, gamma, beta, *, l_tile=512,
                  mxu_dtype=jnp.float32):
    """x_ncl: (N, C_in, L) like PyTorch. Returns (N, C_out, L)."""
    # Conv bias is a per-channel constant -> exactly cancelled by training-mode
    # BatchNorm (mean subtraction; variance is shift-invariant). Drop it.
    del b

    N, C_in, L = x_ncl.shape
    C_out = w.shape[0]

    C_in_p = _round_up(C_in, LANE)
    C_out_p = _round_up(C_out, LANE)
    l_tile = max(HALO_BLK, min(l_tile, _round_up(L, HALO_BLK)))
    l_tile = _round_up(l_tile, HALO_BLK)
    L_pad = _round_up(L, l_tile)
    n_l = L_pad // l_tile
    lb = l_tile // HALO_BLK          # halo-blocks (8 rows) per L tile

    # Single layout copy: NCL -> NLC (channels on the lane axis), channels padded
    # to a lane-dense multiple of 128, L padded up to a multiple of the L-tile.
    # (No extra halo pad: halos are fetched via neighbor blocks in the kernel.)
    # TODO(synk): a real pipeline should keep activations in NLC end-to-end so
    # this transpose and the final one disappear.
    x_nlc = jnp.transpose(x_ncl, (0, 2, 1))
    x_p = jnp.pad(x_nlc, ((0, 0), (0, L_pad - L), (0, C_in_p - C_in)))

    # (C_out, C_in, 7) -> (7*C_in_p, C_out_p); row order matches the im2col order.
    w_t = jnp.transpose(w, (2, 1, 0))                               # (7, C_in, C_out)
    w_t = jnp.pad(w_t, ((0, 0), (0, C_in_p - C_in), (0, C_out_p - C_out)))
    w_cat = w_t.reshape(KERNEL_SIZE * C_in_p, C_out_p).astype(mxu_dtype)

    grid = (N, n_l)

    prev_spec = pl.BlockSpec(
        (1, HALO_BLK, C_in_p),
        lambda n, j: (n, jnp.maximum(j * lb - 1, 0), 0))
    cur_spec = pl.BlockSpec((1, l_tile, C_in_p), lambda n, j: (n, j, 0))
    next_spec = pl.BlockSpec(
        (1, HALO_BLK, C_in_p),
        lambda n, j: (n, jnp.where(j == n_l - 1, 0, (j + 1) * lb), 0))
    w_spec = pl.BlockSpec((KERNEL_SIZE * C_in_p, C_out_p), lambda n, j: (0, 0))
    conv_spec = pl.BlockSpec((1, l_tile, C_out_p), lambda n, j: (n, j, 0))
    stats_spec = pl.BlockSpec((1, 1, 2, C_out_p), lambda n, j: (n, j, 0, 0))

    # Tile sizes are chosen so 2x double-buffered tiles + resident weights fit
    # comfortably inside 32 MiB (safe for v5e/v6e/v7x scoped VMEM).
    params = pltpu.CompilerParams(
        dimension_semantics=("parallel", "parallel"),
        vmem_limit_bytes=32 * 1024 * 1024)

    conv_flops = 2 * N * L_pad * KERNEL_SIZE * C_in_p * C_out_p
    conv_bytes = 4 * (x_p.size + w_cat.size
                      + N * L_pad * C_out_p + N * n_l * 2 * C_out_p)

    conv_out, stats = pl.pallas_call(
        functools.partial(_conv_stats_kernel, n_l_tiles=n_l, l_tile=l_tile,
                          l_valid=L, mxu_dtype=mxu_dtype),
        grid=grid,
        in_specs=[prev_spec, cur_spec, next_spec, w_spec],
        out_specs=[conv_spec, stats_spec],
        out_shape=[jax.ShapeDtypeStruct((N, L_pad, C_out_p), jnp.float32),
                   jax.ShapeDtypeStruct((N, n_l, 2, C_out_p), jnp.float32)],
        compiler_params=params,
        cost_estimate=pl.CostEstimate(flops=conv_flops, transcendentals=0,
                                      bytes_accessed=conv_bytes),
    )(x_p, x_p, x_p, w_cat)

    # Global training-mode BN statistics from per-tile partial sums
    # (tiny per-channel reduction; var = E[x^2] - mean^2).
    tot = jnp.sum(stats, axis=(0, 1))                 # (2, C_out_p)
    count = float(N * L)
    mean = tot[0] / count
    var = jnp.maximum(tot[1] / count - mean * mean, 0.0)
    inv = lax.rsqrt(var + BN_EPS)
    gamma_p = jnp.pad(gamma, (0, C_out_p - C_out))
    beta_p = jnp.pad(beta, (0, C_out_p - C_out))
    scale = (gamma_p * inv).reshape(1, 1, C_out_p)
    shift = (beta_p - mean * gamma_p * inv).reshape(1, 1, C_out_p)

    vec_spec = pl.BlockSpec((1, 1, C_out_p), lambda n, j: (0, 0, 0))
    bn_bytes = 4 * (2 * N * L_pad * C_out_p + 2 * C_out_p)
    out_nlc = pl.pallas_call(
        _bn_relu_kernel,
        grid=grid,
        in_specs=[conv_spec, vec_spec, vec_spec],
        out_specs=conv_spec,
        out_shape=jax.ShapeDtypeStruct((N, L_pad, C_out_p), jnp.float32),
        compiler_params=params,
        cost_estimate=pl.CostEstimate(flops=2 * N * L_pad * C_out_p,
                                      transcendentals=0,
                                      bytes_accessed=bn_bytes),
    )(conv_out, scale, shift)

    # Strip channel / length padding, return PyTorch's NCL layout.
    return jnp.transpose(out_nlc[:, :L, :C_out], (0, 2, 1))


# --------------------------------------------------------------------------
# Pure-JAX reference matching PyTorch Conv7.forward (training-mode BN)
# --------------------------------------------------------------------------
def reference_forward(x_ncl, w, b, gamma, beta):
    out = lax.conv_general_dilated(
        x_ncl, w, window_strides=(1,), padding=((PAD, PAD),),
        dimension_numbers=("NCH", "OIH", "NCH"))
    out = out + b.reshape(1, -1, 1)
    mean = jnp.mean(out, axis=(0, 2), keepdims=True)
    var = jnp.mean((out - mean) ** 2, axis=(0, 2), keepdims=True)
    out = (out - mean) / jnp.sqrt(var + BN_EPS)
    out = out * gamma.reshape(1, -1, 1) + beta.reshape(1, -1, 1)
    return jnp.maximum(out, 0.0)


if __name__ == "__main__":
    # Small shapes consistent with the module: N=2, C_in=4, C_out=8, L=64.
    N, C_in, C_out, L = 2, 4, 8, 64

    key = jax.random.PRNGKey(0)
    kx, kw, kb, kg, kbe, kx2 = jax.random.split(key, 6)

    x = jax.random.normal(kx, (N, C_in, L), dtype=jnp.float32)

    fan_in = C_in * KERNEL_SIZE
    bound = 1.0 / (fan_in ** 0.5)
    w = jax.random.uniform(kw, (C_out, C_in, KERNEL_SIZE),
                           minval=-bound, maxval=bound, dtype=jnp.float32)
    b = jax.random.uniform(kb, (C_out,),
                           minval=-bound, maxval=bound, dtype=jnp.float32)
    # Perturb gamma/beta from the (1, 0) init so the BN affine path is exercised.
    gamma = 1.0 + 0.1 * jax.random.normal(kg, (C_out,), dtype=jnp.float32)
    beta = 0.1 * jax.random.normal(kbe, (C_out,), dtype=jnp.float32)

    out = jax.block_until_ready(conv7_forward(x, w, b, gamma, beta))
    ref = reference_forward(x, w, b, gamma, beta)
    assert out.shape == (N, C_out, L)
    assert jnp.allclose(out, ref, atol=1e-4, rtol=1e-4), (
        f"mismatch vs reference, max abs err {jnp.max(jnp.abs(out - ref))}")

    # Second (still small) shape exercising the multi-L-tile path: halos between
    # tiles, length padding/masking, and the cross-tile BN-stat reduction.
    L2 = 80
    x2 = jax.random.normal(kx2, (N, C_in, L2), dtype=jnp.float32)
    out2 = jax.block_until_ready(
        conv7_forward(x2, w, b, gamma, beta, l_tile=32))
    ref2 = reference_forward(x2, w, b, gamma, beta)
    assert out2.shape == (N, C_out, L2)
    assert jnp.allclose(out2, ref2, atol=1e-4, rtol=1e-4), (
        f"tiled-path mismatch, max abs err {jnp.max(jnp.abs(out2 - ref2))}")

    print("KERNEL_OK")
</pallas_src>

<mosaic_0001>
module attributes {stable_mosaic.version = 11 : i64} {
  func.func @_conv_stats_kernel(%arg0: i32, %arg1: i32, %arg2: memref<1x8x128xf32, #tpu.memory_space<vmem>>, %arg3: memref<1x64x128xf32, #tpu.memory_space<vmem>>, %arg4: memref<1x8x128xf32, #tpu.memory_space<vmem>>, %arg5: memref<896x128xf32, #tpu.memory_space<vmem>>, %arg6: memref<1x64x128xf32, #tpu.memory_space<vmem>>, %arg7: memref<1x1x2x128xf32, #tpu.memory_space<vmem>>) attributes {dimension_semantics = [#tpu.dimension_semantics<parallel>, #tpu.dimension_semantics<parallel>], iteration_bounds = array<i64: 2, 1>, scalar_prefetch = 0 : i64, scratch_operands = 0 : i64, tpu.core_type = #tpu.core_type<tc>, window_params = [{transform_indices = @transform_0, window_bounds = array<i64: 1, 8, 128>}, {transform_indices = @transform_1, window_bounds = array<i64: 1, 64, 128>}, {transform_indices = @transform_2, window_bounds = array<i64: 1, 8, 128>}, {pipeline_mode = #tpu.pipeline_mode<synchronous>, transform_indices = @transform_3, window_bounds = array<i64: 896, 128>}, {transform_indices = @transform_4, window_bounds = array<i64: 1, 64, 128>}, {transform_indices = @transform_5, window_bounds = array<i64: 1, 1, 2, 128>}]} {
    %c0 = arith.constant 0 : index
    %c5 = arith.constant 5 : index
    %c0_0 = arith.constant 0 : index
    %0 = vector.load %arg2[%c0, %c5, %c0_0] : memref<1x8x128xf32, #tpu.memory_space<vmem>>, vector<1x3x128xf32>
    %1 = vector.shape_cast %0 : vector<1x3x128xf32> to vector<3x128xf32>
    %c0_i32 = arith.constant 0 : i32
    %2 = arith.cmpi eq, %arg1, %c0_i32 : i32
    %cst = arith.constant 0.000000e+00 : f32
    %3 = vector.broadcast %cst : f32 to vector<3x128xf32>
    %4 = arith.select %2, %3, %1 : vector<3x128xf32>
    %c0_1 = arith.constant 0 : index
    %c0_2 = arith.constant 0 : index
    %c0_3 = arith.constant 0 : index
    %5 = vector.load %arg4[%c0_1, %c0_2, %c0_3] : memref<1x8x128xf32, #tpu.memory_space<vmem>>, vector<1x3x128xf32>
    %6 = vector.shape_cast %5 : vector<1x3x128xf32> to vector<3x128xf32>
    %c0_i32_4 = arith.constant 0 : i32
    %7 = arith.cmpi eq, %arg1, %c0_i32_4 : i32
    %cst_5 = arith.constant 0.000000e+00 : f32
    %8 = vector.broadcast %cst_5 : f32 to vector<3x128xf32>
    %9 = arith.select %7, %8, %6 : vector<3x128xf32>
    %c0_6 = arith.constant 0 : index
    %c0_7 = arith.constant 0 : index
    %c0_8 = arith.constant 0 : index
    %10 = vector.load %arg3[%c0_6, %c0_7, %c0_8] : memref<1x64x128xf32, #tpu.memory_space<vmem>>, vector<1x64x128xf32>
    %11 = vector.shape_cast %10 : vector<1x64x128xf32> to vector<64x128xf32>
    %12 = tpu.concatenate %4, %11, %9 in 0 : vector<3x128xf32>, vector<64x128xf32>, vector<3x128xf32> -> vector<70x128xf32>
    %13 = vector.extract_strided_slice %12 {offsets = [0, 0], sizes = [64, 128], strides = [1, 1]} : vector<70x128xf32> to vector<64x128xf32>
    %14 = vector.extract_strided_slice %12 {offsets = [1, 0], sizes = [64, 128], strides = [1, 1]} : vector<70x128xf32> to vector<64x128xf32>
    %15 = vector.extract_strided_slice %12 {offsets = [2, 0], sizes = [64, 128], strides = [1, 1]} : vector<70x128xf32> to vector<64x128xf32>
    %16 = vector.extract_strided_slice %12 {offsets = [3, 0], sizes = [64, 128], strides = [1, 1]} : vector<70x128xf32> to vector<64x128xf32>
    %17 = vector.extract_strided_slice %12 {offsets = [4, 0], sizes = [64, 128], strides = [1, 1]} : vector<70x128xf32> to vector<64x128xf32>
    %18 = vector.extract_strided_slice %12 {offsets = [5, 0], sizes = [64, 128], strides = [1, 1]} : vector<70x128xf32> to vector<64x128xf32>
    %19 = vector.extract_strided_slice %12 {offsets = [6, 0], sizes = [64, 128], strides = [1, 1]} : vector<70x128xf32> to vector<64x128xf32>
    %20 = tpu.concatenate %13, %14, %15, %16, %17, %18, %19 in 1 : vector<64x128xf32>, vector<64x128xf32>, vector<64x128xf32>, vector<64x128xf32>, vector<64x128xf32>, vector<64x128xf32>, vector<64x128xf32> -> vector<64x896xf32>
    %c0_9 = arith.constant 0 : index
    %c0_10 = arith.constant 0 : index
    %21 = vector.load %arg5[%c0_9, %c0_10] : memref<896x128xf32, #tpu.memory_space<vmem>>, vector<896x128xf32>
    %cst_11 = arith.constant dense<0.000000e+00> : vector<64x128xf32>
    %22 = tpu.matmul %20, %21, %cst_11 {dimension_numbers = #tpu.dot_dimension_numbers<[1], [0], [0], [1], [0, 0, 1, 1], [], []>} : vector<64x896xf32>, vector<896x128xf32>, vector<64x128xf32> -> vector<64x128xf32>
    %c0_12 = arith.constant 0 : index
    %c0_13 = arith.constant 0 : index
    %c0_14 = arith.constant 0 : index
    %23 = vector.load %arg6[%c0_12, %c0_13, %c0_14] : memref<1x64x128xf32, #tpu.memory_space<vmem>>, vector<1x64x128xf32>
    %24 = vector.shape_cast %23 : vector<1x64x128xf32> to vector<64x128xf32>
    %25 = vector.shape_cast %22 : vector<64x128xf32> to vector<1x64x128xf32>
    tpu.vector_store %arg6[%c0_12, %c0_13, %c0_14], %25 {strides = array<i32>} : memref<1x64x128xf32, #tpu.memory_space<vmem>>, vector<1x64x128xf32>,
    %c64_i32 = arith.constant 64 : i32
    %26 = arith.muli %arg1, %c64_i32 : i32
    %27 = tpu.iota {dimensions = array<i32: 0>} : vector<64x1xi32>
    %28 = vector.broadcast %26 : i32 to vector<64x1xi32>
    %29 = arith.addi %28, %27 : vector<64x1xi32>
    %c64_i32_15 = arith.constant 64 : i32
    %30 = vector.broadcast %c64_i32_15 : i32 to vector<64x1xi32>
    %31 = arith.cmpi slt, %29, %30 : vector<64x1xi32>
    %cst_16 = arith.constant 0.000000e+00 : f32
    %32 = vector.shape_cast %31 : vector<64x1xi1> to vector<64x1xi1>
    %33 = vector.broadcast %32 : vector<64x1xi1> to vector<64x128xi1>
    %34 = vector.broadcast %cst_16 : f32 to vector<64x128xf32>
    %35 = arith.select %33, %22, %34 : vector<64x128xi1>, vector<64x128xf32>
    %cst_17 = arith.constant dense<0.000000e+00> : vector<128xf32>
    %36 = vector.multi_reduction <add>, %35, %cst_17 [0] : vector<64x128xf32> to vector<128xf32>
    %37 = vector.shape_cast %36 : vector<128xf32> to vector<1x128xf32>
    %38 = arith.mulf %35, %35 : vector<64x128xf32>
    %cst_18 = arith.constant dense<0.000000e+00> : vector<128xf32>
    %39 = vector.multi_reduction <add>, %38, %cst_18 [0] : vector<64x128xf32> to vector<128xf32>
    %40 = vector.shape_cast %39 : vector<128xf32> to vector<1x128xf32>
    %41 = tpu.concatenate %37, %40 in 0 : vector<1x128xf32>, vector<1x128xf32> -> vector<2x128xf32>
    %c0_19 = arith.constant 0 : index
    %c0_20 = arith.constant 0 : index
    %c0_21 = arith.constant 0 : index
    %c0_22 = arith.constant 0 : index
    %42 = vector.load %arg7[%c0_19, %c0_20, %c0_21, %c0_22] : memref<1x1x2x128xf32, #tpu.memory_space<vmem>>, vector<1x1x2x128xf32>
    %43 = vector.shape_cast %42 : vector<1x1x2x128xf32> to vector<2x128xf32>
    %44 = vector.shape_cast %41 : vector<2x128xf32> to vector<1x1x2x128xf32>
    tpu.vector_store %arg7[%c0_19, %c0_20, %c0_21, %c0_22], %44 {strides = array<i32>} : memref<1x1x2x128xf32, #tpu.memory_space<vmem>>, vector<1x1x2x128xf32>,
    return
  }
  func.func @transform_0(%arg0: i32, %arg1: i32) -> (i32, i32, i32) {
    %c8_i32 = arith.constant 8 : i32
    %0 = arith.muli %arg1, %c8_i32 : i32
    %c1_i32 = arith.constant 1 : i32
    %1 = arith.subi %0, %c1_i32 : i32
    %c0_i32 = arith.constant 0 : i32
    %2 = arith.maxsi %1, %c0_i32 : i32
    %c0_i32_0 = arith.constant 0 : i32
    %c0_i32_1 = arith.constant 0 : i32
    return %arg0, %2, %c0_i32_0 : i32, i32, i32
  }
  func.func @transform_1(%arg0: i32, %arg1: i32) -> (i32, i32, i32) {
    %c0_i32 = arith.constant 0 : i32
    %c0_i32_0 = arith.constant 0 : i32
    return %arg0, %arg1, %c0_i32 : i32, i32, i32
  }
  func.func @transform_2(%arg0: i32, %arg1: i32) -> (i32, i32, i32) {
    %c0_i32 = arith.constant 0 : i32
    %0 = arith.cmpi eq, %arg1, %c0_i32 : i32
    %c1_i32 = arith.constant 1 : i32
    %1 = arith.addi %arg1, %c1_i32 : i32
    %c8_i32 = arith.constant 8 : i32
    %2 = arith.muli %1, %c8_i32 : i32
    %c0_i32_0 = arith.constant 0 : i32
    %3 = arith.select %0, %c0_i32_0, %2 : i32
    %c0_i32_1 = arith.constant 0 : i32
    %c0_i32_2 = arith.constant 0 : i32
    return %arg0, %3, %c0_i32_1 : i32, i32, i32
  }
  func.func @transform_3(%arg0: i32, %arg1: i32) -> (i32, i32) {
    %c0_i32 = arith.constant 0 : i32
    %c0_i32_0 = arith.constant 0 : i32
    %c0_i32_1 = arith.constant 0 : i32
    return %c0_i32, %c0_i32_0 : i32, i32
  }
  func.func @transform_4(%arg0: i32, %arg1: i32) -> (i32, i32, i32) {
    %c0_i32 = arith.constant 0 : i32
    %c0_i32_0 = arith.constant 0 : i32
    return %arg0, %arg1, %c0_i32 : i32, i32, i32
  }
  func.func @transform_5(%arg0: i32, %arg1: i32) -> (i32, i32, i32, i32) {
    %c0_i32 = arith.constant 0 : i32
    %c0_i32_0 = arith.constant 0 : i32
    %c0_i32_1 = arith.constant 0 : i32
    return %arg0, %arg1, %c0_i32, %c0_i32_0 : i32, i32, i32, i32
  }
}

</mosaic_0001>

<llo_original>
// kernel: tpu_custom_call.1
$region0: #{tpu_custom_call.1}
  #allocation0 [shape = 'u32[]', space=smem, size = 0x4, offset = 0x4, fixed_abs, tag = 'smem constant byte address 0x4 - core index']
  #allocation1 [shape = 'u32[72,128]{1,0:T(1,128)}', space=vmem, size = 0x9000, scoped, tag = 'internal scratch']
  %s0 = inlined_call_operand.hbm [shape: f32[2,64,128], index: 0, kind: input, shape index: {}]
  %s1 = inlined_call_operand.hbm [shape: f32[2,64,128], index: 1, kind: input, shape index: {}]
  %s2 = inlined_call_operand.hbm [shape: f32[2,64,128], index: 2, kind: input, shape index: {}]
  %s3 = inlined_call_operand.hbm [shape: f32[896,128], index: 3, kind: input, shape index: {}]
  %s4 = inlined_call_operand.hbm [shape: f32[2,64,128], index: 4, kind: output, shape index: {0}]
  %s5 = inlined_call_operand.hbm [shape: f32[2,1,2,128], index: 5, kind: output, shape index: {1}]
  %6 = xla_tuple %s4, %s5
  %s7 = sld [smem:[#allocation0]]
  $region73: #{tpu_custom_call.1} parent=0
    _
  %s9 = ssub.s32 1, %s7
  %s10 = scalar_select 0, %s9, %s7
  $region1: #{tpu_custom_call.1} parent=0
    #allocation2 [shape = 'u8[8192]{0}', space=vmem, size = 0x2000, scoped, tag = 'input window, operand 0']
    #allocation3 [shape = 's32[2]{0}', space=sflag, size = 0x8, scoped, tag = 'scoped memory for tpu_custom_call.1']
    #allocation4 [shape = 's32[2]{0}', space=sflag, size = 0x8, scoped, tag = 'scoped memory for tpu_custom_call.1']
    #allocation5 [shape = 'u8[65536]{0}', space=vmem, size = 0x10000, scoped, tag = 'input window, operand 1']
    #allocation6 [shape = 's32[2]{0}', space=sflag, size = 0x8, scoped, tag = 'scoped memory for tpu_custom_call.1']
    #allocation7 [shape = 'u8[8192]{0}', space=vmem, size = 0x2000, scoped, tag = 'input window, operand 2']
    #allocation8 [shape = 'u8[458752]{0}', space=vmem, size = 0x70000, scoped, tag = 'input window, operand 3, single buffered']
    #allocation9 [shape = 's32[1]{0}', space=sflag, size = 0x4, scoped, tag = 'scoped memory for tpu_custom_call.1']
    #allocation10 [shape = 'u8[65536]{0}', space=vmem, size = 0x10000, scoped, tag = 'output window, operand 0']
    #allocation11 [shape = 'u8[2048]{0}', space=vmem, size = 0x800, scoped, tag = 'output window, operand 1']
    #allocation12 [shape = 's32[2]{0}', space=sflag, size = 0x8, scoped, tag = 'scoped memory for tpu_custom_call.1']
    %11 = vsyncpa [#allocation3], 0
    %s12 = scalar_lea.sflag [#allocation3], 1
    %13 = vsyncpa %s12, 0
    %14 = vsyncpa [#allocation6], 0
    %s15 = scalar_lea.sflag [#allocation6], 1
    %16 = vsyncpa %s15, 0
    %17 = vsyncpa [#allocation9], 0
    %18 = vsyncpa [#allocation4], 0
    %s19 = scalar_lea.sflag [#allocation4], 1
    %20 = vsyncpa %s19, 0
    %21 = vsyncpa [#allocation12], 0
    %s22 = scalar_lea.sflag [#allocation12], 1
    %23 = vsyncpa %s22, 0
    loop: start=0, step=1, limit=4
    $region2: #{tpu_custom_call.1} parent=1 // loop_pre_header
      _
    $region3: #{tpu_custom_call.1} parent=1 // loop_header
      %s25 = sphi 0, %s29
      %p26 = scmp.ge.s32.totalorder %s25, 4
      %s32 = sphi 0, %s44
      %s33 = sphi 0, %s40
      %s34 = sphi 0, %s32
      %s35 = sphi 0, %s33
      %s36 = sphi 0, %s34
      %s37 = sphi 0, %s35
      %s57 = sphi 0, %s59
      %s60 = sphi 0, %s57
      %s61 = sphi 0, %s60
      %s77 = sphi 0, %s61
      %s85 = sphi 0, %s87
      %s88 = sphi 0, %s85
      %s89 = sphi 0, %s88
      %s105 = sphi 0, %s89
      %s121 = sphi 0, %s123
      %s124 = sphi 0, %s121
      %s125 = sphi 0, %s124
      %s141 = sphi 0, %s125
      %s145 = sphi 0, %s145
      %s147 = sphi 0, %s145
      %s148 = sphi 0, %s147
      %s162 = sphi 0, %s148
      %s170 = sphi 0, %s172
      %s173 = sphi 0, %s170
      %s174 = sphi 0, %s173
      %s190 = sphi 0, %s174
      %s198 = sphi 0, %s200
      %s201 = sphi 0, %s198
      %s202 = sphi 0, %s201
      %s218 = sphi 0, %s202
    $region4: #{tpu_custom_call.1} parent=1 // loop_header_branch
      %28 = sbr.rel (%p26) target = $region8
    $region5: #{tpu_custom_call.1} parent=1 // loop_body
      %s30 = ssub.s32 %s25, 1
      %s31 = ssub.s32 %s25, 2
      %s38 = sadd.s32 1, %s33
      %p39 = scmp.ge.s32.totalorder %s38, 1
      %s40 = scalar_select %p39, 0, %s38
      %s41 = sadd.s32 1, %s32
      %s42 = scalar_select %p39, %s41, %s32
      %p43 = scmp.ge.s32.totalorder %s42, 2
      %s44 = scalar_select %p43, 0, %s42
      %s45 = smul.u32 %s33, 8
      %s46 = ssub.s32 %s45, 1
      %p47 = scmp.gt.s32.totalorder %s46, 0
      %s48 = scalar_select %p47, %s46, 0
      %s49 = smul.u32 %s40, 8
      %s50 = ssub.s32 %s49, 1
      %p51 = scmp.gt.s32.totalorder %s50, 0
      %s52 = scalar_select %p51, %s50, 0
      %s53 = ssub.s32 %s32, %s44
      %s54 = ssub.s32 %s48, %s52
      %s55 = sor.u32 %s53, %s54
      %p56 = scmp.eq.s32.totalorder %s55, 0
      %s58 = sadd.s32 %s57, 1
      %s59 = scalar_select %p56, %s57, %s58
      %p62 = pneg %p56
      %p63 = scmp.eq.s32.totalorder %s25, 1
      %p64 = por %p62, %p63
      %p65 = scmp.ne.s32.totalorder %s57, %s60
      %p66 = scmp.eq.s32.totalorder %s25, 0
      %p67 = por %p65, %p66
      %p68 = scmp.ne.s32.totalorder %s57, %s60
      %p69 = scmp.eq.s32.totalorder %s30, 1
      %p70 = por %p68, %p69
      %p71 = scmp.ne.s32.totalorder %s60, %s61
      %p72 = scmp.eq.s32.totalorder %s30, 0
      %p73 = por %p71, %p72
      %p74 = scmp.ne.s32.totalorder %s60, %s61
      %p75 = scmp.eq.s32.totalorder %s31, 1
      %p76 = por %p74, %p75
      %p78 = scmp.ne.s32.totalorder %s61, %s77
      %p79 = scmp.eq.s32.totalorder %s31, 0
      %p80 = por %p78, %p79
      %s81 = ssub.s32 %s32, %s44
      %s82 = ssub.s32 %s33, %s40
      %s83 = sor.u32 %s81, %s82
      %p84 = scmp.eq.s32.totalorder %s83, 0
      %s86 = sadd.s32 %s85, 1
      %s87 = scalar_select %p84, %s85, %s86
      %p90 = pneg %p84
      %p91 = scmp.eq.s32.totalorder %s25, 1
      %p92 = por %p90, %p91
      %p93 = scmp.ne.s32.totalorder %s85, %s88
      %p94 = scmp.eq.s32.totalorder %s25, 0
      %p95 = por %p93, %p94
      %p96 = scmp.ne.s32.totalorder %s85, %s88
      %p97 = scmp.eq.s32.totalorder %s30, 1
      %p98 = por %p96, %p97
      %p99 = scmp.ne.s32.totalorder %s88, %s89
      %p100 = scmp.eq.s32.totalorder %s30, 0
      %p101 = por %p99, %p100
      %p102 = scmp.ne.s32.totalorder %s88, %s89
      %p103 = scmp.eq.s32.totalorder %s31, 1
      %p104 = por %p102, %p103
      %p106 = scmp.ne.s32.totalorder %s89, %s105
      %p107 = scmp.eq.s32.totalorder %s31, 0
      %p108 = por %p106, %p107
      %p109 = scmp.eq.s32.totalorder %s33, 0
      %s110 = sadd.s32 %s33, 1
      %s111 = smul.u32 %s110, 8
      %s112 = scalar_select %p109, 0, %s111
      %p113 = scmp.eq.s32.totalorder %s40, 0
      %s114 = sadd.s32 %s40, 1
      %s115 = smul.u32 %s114, 8
      %s116 = scalar_select %p113, 0, %s115
      %s117 = ssub.s32 %s32, %s44
      %s118 = ssub.s32 %s112, %s116
      %s119 = sor.u32 %s117, %s118
      %p120 = scmp.eq.s32.totalorder %s119, 0
      %s122 = sadd.s32 %s121, 1
      %s123 = scalar_select %p120, %s121, %s122
      %p126 = pneg %p120
      %p127 = scmp.eq.s32.totalorder %s25, 1
      %p128 = por %p126, %p127
      %p129 = scmp.ne.s32.totalorder %s121, %s124
      %p130 = scmp.eq.s32.totalorder %s25, 0
      %p131 = por %p129, %p130
      %p132 = scmp.ne.s32.totalorder %s121, %s124
      %p133 = scmp.eq.s32.totalorder %s30, 1
      %p134 = por %p132, %p133
      %p135 = scmp.ne.s32.totalorder %s124, %s125
      %p136 = scmp.eq.s32.totalorder %s30, 0
      %p137 = por %p135, %p136
      %p138 = scmp.ne.s32.totalorder %s124, %s125
      %p139 = scmp.eq.s32.totalorder %s31, 1
      %p140 = por %p138, %p139
      %p142 = scmp.ne.s32.totalorder %s125, %s141
      %p143 = scmp.eq.s32.totalorder %s31, 0
      %p144 = por %p142, %p143
      %s146 = sadd.s32 %s145, 1
      %p149 = scmp.eq.s32.totalorder %s25, 1
      %p150 = scmp.ne.s32.totalorder %s145, %s147
      %p151 = scmp.eq.s32.totalorder %s25, 0
      %p152 = por %p150, %p151
      %p153 = scmp.ne.s32.totalorder %s145, %s147
      %p154 = scmp.eq.s32.totalorder %s30, 1
      %p155 = por %p153, %p154
      %p156 = scmp.ne.s32.totalorder %s147, %s148
      %p157 = scmp.eq.s32.totalorder %s30, 0
      %p158 = por %p156, %p157
      %p159 = scmp.ne.s32.totalorder %s147, %s148
      %p160 = scmp.eq.s32.totalorder %s31, 1
      %p161 = por %p159, %p160
      %p163 = scmp.ne.s32.totalorder %s148, %s162
      %p164 = scmp.eq.s32.totalorder %s31, 0
      %p165 = por %p163, %p164
      %s166 = ssub.s32 %s32, %s44
      %s167 = ssub.s32 %s33, %s40
      %s168 = sor.u32 %s166, %s167
      %p169 = scmp.eq.s32.totalorder %s168, 0
      %s171 = sadd.s32 %s170, 1
      %s172 = scalar_select %p169, %s170, %s171
      %p175 = pneg %p169
      %p176 = scmp.eq.s32.totalorder %s25, 1
      %p177 = por %p175, %p176
      %p178 = scmp.ne.s32.totalorder %s170, %s173
      %p179 = scmp.eq.s32.totalorder %s25, 0
      %p180 = por %p178, %p179
      %p181 = scmp.ne.s32.totalorder %s170, %s173
      %p182 = scmp.eq.s32.totalorder %s30, 1
      %p183 = por %p181, %p182
      %p184 = scmp.ne.s32.totalorder %s173, %s174
      %p185 = scmp.eq.s32.totalorder %s30, 0
      %p186 = por %p184, %p185
      %p187 = scmp.ne.s32.totalorder %s173, %s174
      %p188 = scmp.eq.s32.totalorder %s31, 1
      %p189 = por %p187, %p188
      %p191 = scmp.ne.s32.totalorder %s174, %s190
      %p192 = scmp.eq.s32.totalorder %s31, 0
      %p193 = por %p191, %p192
      %s194 = ssub.s32 %s32, %s44
      %s195 = ssub.s32 %s33, %s40
      %s196 = sor.u32 %s194, %s195
      %p197 = scmp.eq.s32.totalorder %s196, 0
      %s199 = sadd.s32 %s198, 1
      %s200 = scalar_select %p197, %s198, %s199
      %p203 = pneg %p197
      %p204 = scmp.eq.s32.totalorder %s25, 1
      %p205 = por %p203, %p204
      %p206 = scmp.ne.s32.totalorder %s198, %s201
      %p207 = scmp.eq.s32.totalorder %s25, 0
      %p208 = por %p206, %p207
      %p209 = scmp.ne.s32.totalorder %s198, %s201
      %p210 = scmp.eq.s32.totalorder %s30, 1
      %p211 = por %p209, %p210
      %p212 = scmp.ne.s32.totalorder %s201, %s202
      %p213 = scmp.eq.s32.totalorder %s30, 0
      %p214 = por %p212, %p213
      %p215 = scmp.ne.s32.totalorder %s201, %s202
      %p216 = scmp.eq.s32.totalorder %s31, 1
      %p217 = por %p215, %p216
      %p219 = scmp.ne.s32.totalorder %s202, %s218
      %p220 = scmp.eq.s32.totalorder %s31, 0
      %p221 = por %p219, %p220
      %p222 = scmp.le.s32.totalorder 1, %s25
      %p223 = scmp.lt.s32.totalorder %s25, 3
      %p224 = pnand %p222, %p223
      %p225 = pneg %p224
      // Predicated region
      $region9: #{tpu_custom_call.1} parent=5 // pred_check
        _
      $region10: #{tpu_custom_call.1} parent=5 // pred_check_branch
        %227 = sbr.rel (%p224) target = $region12
      $region11: #{tpu_custom_call.1} parent=5 // pred_region
        %s228 = ssub.s32 %s25, 1
        // Predicated region
        $region13: #{tpu_custom_call.1} parent=11 // pred_check
          %p229 = pneg %p158
        $region14: #{tpu_custom_call.1} parent=11 // pred_check_branch
          %231 = sbr.rel (%p229) target = $region16
        $region15: #{tpu_custom_call.1} parent=11 // pred_region
          %233 = vsyncadd [#allocation9], 0
          %s234 = sshll.u32 %s3, 4
          %s235 = int_to_ptr.hbm [resolvable:$true] %s234
          %s236 = sshll.u32 [#allocation8], 4
          %s237 = int_to_ptr.vmem [resolvable:$true] %s236
          %242 = dma.hbm_to_vmem [thread:$0]  %s235, 14336, %s237, [#allocation9], 128, 128, 8
        $region16: #{tpu_custom_call.1} parent=11 // pred_fallthru
          _
      $region12: #{tpu_custom_call.1} parent=5 // pred_fallthru
        _
      %p243 = scmp.lt.s32.totalorder %s25, 2
      // Predicated region
      $region17: #{tpu_custom_call.1} parent=5 // pred_check
        %p244 = pneg %p243
      $region18: #{tpu_custom_call.1} parent=5 // pred_check_branch
        %246 = sbr.rel (%p244) target = $region20
      $region19: #{tpu_custom_call.1} parent=5 // pred_region
        // Predicated region
        $region21: #{tpu_custom_call.1} parent=19 // pred_check
          %p247 = pneg %p67
        $region22: #{tpu_custom_call.1} parent=19 // pred_check_branch
          %249 = sbr.rel (%p247) target = $region24
        $region23: #{tpu_custom_call.1} parent=19 // pred_region
          %s250 = sand.u32 %s57, 1
          %s251 = scalar_lea.sflag [#allocation3], %s250
          %s252 = sand.u32 %s57, 1
          %s253 = smul.addr %s252, 8
          %s254 = scalar_lea.vmem [#allocation2], %s253
          %s255 = smul.u32 %s33, 8
          %s256 = ssub.s32 %s255, 1
          %p257 = scmp.gt.s32.totalorder %s256, 0
          %s258 = scalar_select %p257, %s256, 0
          %260 = vsyncadd %s251, 0
          %s261 = smul.addr %s32, 8
          %s262 = sadd.s32 %s258, %s261
          %s263 = smul.addr %s262, 8
          %s264 = scalar_lea.hbm %s0, %s263
          %s266 = sshll.u32 %s264, 4
          %s267 = int_to_ptr.hbm [resolvable:$true] %s266
          %s268 = sshll.u32 %s254, 4
          %s269 = int_to_ptr.vmem [resolvable:$true] %s268
          %271 = dma.hbm_to_vmem [thread:$0]  %s267, 128, %s269, %s251
        $region24: #{tpu_custom_call.1} parent=19 // pred_fallthru
          _
        // Predicated region
        $region25: #{tpu_custom_call.1} parent=19 // pred_check
          %p272 = pneg %p95
        $region26: #{tpu_custom_call.1} parent=19 // pred_check_branch
          %274 = sbr.rel (%p272) target = $region28
        $region27: #{tpu_custom_call.1} parent=19 // pred_region
          %s275 = sand.u32 %s25, 1
          %s276 = scalar_lea.sflag [#allocation6], %s275
          %s277 = sand.u32 %s85, 1
          %s278 = smul.addr %s277, 64
          %s279 = scalar_lea.vmem [#allocation5], %s278
          %s280 = smul.u32 8, %s33
          %282 = vsyncadd %s276, 0
          %s283 = smul.addr %s32, 8
          %s284 = sadd.s32 %s280, %s283
          %s285 = smul.addr %s284, 8
          %s286 = scalar_lea.hbm %s1, %s285
          %s287 = sshll.u32 %s286, 4
          %s288 = int_to_ptr.hbm [resolvable:$true] %s287
          %s289 = sshll.u32 %s279, 4
          %s290 = int_to_ptr.vmem [resolvable:$true] %s289
          %295 = dma.hbm_to_vmem [thread:$0]  %s288, 1024, %s290, %s276, 128, 128, 8
        $region28: #{tpu_custom_call.1} parent=19 // pred_fallthru
          _
        // Predicated region
        $region29: #{tpu_custom_call.1} parent=19 // pred_check
          %p296 = pneg %p131
        $region30: #{tpu_custom_call.1} parent=19 // pred_check_branch
          %298 = sbr.rel (%p296) target = $region32
        $region31: #{tpu_custom_call.1} parent=19 // pred_region
          %s299 = sand.u32 %s25, 1
          %s300 = scalar_lea.sflag [#allocation6], %s299
          %s301 = sand.u32 %s121, 1
          %s302 = smul.addr %s301, 8
          %s303 = scalar_lea.vmem [#allocation7], %s302
          %p304 = scmp.eq.s32.totalorder %s33, 0
          %s305 = sadd.s32 %s33, 1
          %s306 = smul.u32 %s305, 8
          %s307 = scalar_select %p304, 0, %s306
          %309 = vsyncadd %s300, 0
          %s310 = smul.addr %s32, 8
          %s311 = sadd.s32 %s307, %s310
          %s312 = smul.addr %s311, 8
          %s313 = scalar_lea.hbm %s2, %s312
          %s315 = sshll.u32 %s313, 4
          %s316 = int_to_ptr.hbm [resolvable:$true] %s315
          %s317 = sshll.u32 %s303, 4
          %s318 = int_to_ptr.vmem [resolvable:$true] %s317
          %320 = dma.hbm_to_vmem [thread:$0]  %s316, 128, %s318, %s300
        $region32: #{tpu_custom_call.1} parent=19 // pred_fallthru
          _
      $region20: #{tpu_custom_call.1} parent=5 // pred_fallthru
        _
      %p321 = scmp.le.s32.totalorder 1, %s25
      %p322 = scmp.lt.s32.totalorder %s25, 3
      %p323 = pnand %p321, %p322
      %p324 = pneg %p323
      // Predicated region
      $region33: #{tpu_custom_call.1} parent=5 // pred_check
        _
      $region34: #{tpu_custom_call.1} parent=5 // pred_check_branch
        %326 = sbr.rel (%p323) target = $region36
      $region35: #{tpu_custom_call.1} parent=5 // pred_region
        %s327 = ssub.s32 %s25, 1
        %s328 = sand.u32 %s60, 1
        %s329 = scalar_lea.sflag [#allocation3], %s328
        %s330 = sand.u32 %s60, 1
        %s331 = smul.addr %s330, 8
        %s332 = scalar_lea.vmem [#allocation2], %s331
        // Predicated region
        $region37: #{tpu_custom_call.1} parent=35 // pred_check
          %p333 = pneg %p73
        $region38: #{tpu_custom_call.1} parent=35 // pred_check_branch
          %335 = sbr.rel (%p333) target = $region40
        $region39: #{tpu_custom_call.1} parent=35 // pred_region
          %337 = dma.done %s329, 128
        $region40: #{tpu_custom_call.1} parent=35 // pred_fallthru
          _
        %s338 = sand.u32 %s30, 1
        %s339 = scalar_lea.sflag [#allocation6], %s338
        %s340 = sand.u32 %s88, 1
        %s341 = smul.addr %s340, 64
        %s342 = scalar_lea.vmem [#allocation5], %s341
        // Predicated region
        $region41: #{tpu_custom_call.1} parent=35 // pred_check
          %p343 = pneg %p101
        $region42: #{tpu_custom_call.1} parent=35 // pred_check_branch
          %345 = sbr.rel (%p343) target = $region44
        $region43: #{tpu_custom_call.1} parent=35 // pred_region
          %347 = dma.done %s339, 1024
        $region44: #{tpu_custom_call.1} parent=35 // pred_fallthru
          _
        %s348 = sand.u32 %s30, 1
        %s349 = scalar_lea.sflag [#allocation6], %s348
        %s350 = sand.u32 %s124, 1
        %s351 = smul.addr %s350, 8
        %s352 = scalar_lea.vmem [#allocation7], %s351
        // Predicated region
        $region45: #{tpu_custom_call.1} parent=35 // pred_check
          %p353 = pneg %p137
        $region46: #{tpu_custom_call.1} parent=35 // pred_check_branch
          %355 = sbr.rel (%p353) target = $region48
        $region47: #{tpu_custom_call.1} parent=35 // pred_region
          %357 = dma.done %s349, 128
        $region48: #{tpu_custom_call.1} parent=35 // pred_fallthru
          _
        // Predicated region
        $region49: #{tpu_custom_call.1} parent=35 // pred_check
          %p358 = pneg %p158
        $region50: #{tpu_custom_call.1} parent=35 // pred_check_branch
          %360 = sbr.rel (%p358) target = $region52
        $region51: #{tpu_custom_call.1} parent=35 // pred_region
          %362 = dma.done [#allocation9], 14336
        $region52: #{tpu_custom_call.1} parent=35 // pred_fallthru
          _
        %s363 = sand.u32 %s60, 1
        %s364 = scalar_lea.sflag [#allocation3], %s363
        %s365 = sand.u32 %s60, 1
        %s366 = smul.addr %s365, 8
        %s367 = scalar_lea.vmem [#allocation2], %s366
        %p368 = pneg %p73
        %p369 = pneg %p70
        %s370 = sand.u32 %s30, 1
        %s371 = scalar_lea.sflag [#allocation6], %s370
        %s372 = sand.u32 %s88, 1
        %s373 = smul.addr %s372, 64
        %s374 = scalar_lea.vmem [#allocation5], %s373
        %p375 = pneg %p101
        %p376 = pneg %p98
        %s377 = sand.u32 %s30, 1
        %s378 = scalar_lea.sflag [#allocation6], %s377
        %s379 = sand.u32 %s124, 1
        %s380 = smul.addr %s379, 8
        %s381 = scalar_lea.vmem [#allocation7], %s380
        %p382 = pneg %p137
        %p383 = pneg %p134
        %p384 = pneg %p158
        %p385 = pneg %p155
        %p386 = pneg %p186
        %p387 = pneg %p183
        %s388 = sand.u32 %s173, 1
        %s389 = scalar_lea.sflag [#allocation4], %s388
        %s390 = sand.u32 %s173, 1
        %s391 = smul.addr %s390, 64
        %s392 = scalar_lea.vmem [#allocation10], %s391
        %p393 = pneg %p214
        %p394 = pneg %p211
        %s395 = sand.u32 %s201, 1
        %s396 = scalar_lea.sflag [#allocation12], %s395
        %s397 = sand.u32 %s201, 1
        %s398 = smul.addr %s397, 2
        %s399 = scalar_lea.vmem [#allocation11], %s398
        %s400 = smul.u32 %s35, 8
        %s401 = ssub.s32 %s400, 1
        %p402 = scmp.gt.s32.totalorder %s401, 0
        %s403 = scalar_select %p402, %s401, 0
        %s404 = smul.u32 8, %s35
        %p405 = scmp.eq.s32.totalorder %s35, 0
        %s406 = sadd.s32 %s35, 1
        %s407 = smul.u32 %s406, 8
        %s408 = scalar_select %p405, 0, %s407
        %s409 = smul.u32 8, %s35
        %v410 = vld [vmem:[%s332 + $0x5] sm:$0x7]
        %p411 = scmp.eq.s32.totalorder %s35, 0
        %s412 = scalar_select %p411, 1, 0
        %v413 = vstv %s412
        %vm414 = vcmp.eq.s32.totalorder %v413, 1
        %v415 = vsel %vm414, 0.0, %v410
        %v416 = vld [vmem:[%s352] sm:$0x7]
        %v417 = vsel %vm414, 0.0, %v416
        %v418 = vld [vmem:[%s342] sm:$0xff]
        %v419 = vld [vmem:[%s342 + $0x8] sm:$0xff]
        %v420 = vld [vmem:[%s342 + $0x10] sm:$0xff]
        %v421 = vld [vmem:[%s342 + $0x18] sm:$0xff]
        %v422 = vld [vmem:[%s342 + $0x20] sm:$0xff]
        %v423 = vld [vmem:[%s342 + $0x28] sm:$0xff]
        %v424 = vld [vmem:[%s342 + $0x30] sm:$0xff]
        %v425 = vld [vmem:[%s342 + $0x38] sm:$0xff]
        %vm434 = vcmask 1042432
        %v435 = vrot.slane %v418, 5
        %v436 = vrot.slane %v419, 5
        %v437 = vsel %vm434, %v435, %v436
        %v438 = vrot.slane %v420, 5
        %v439 = vsel %vm434, %v436, %v438
        %v440 = vrot.slane %v421, 5
        %v441 = vsel %vm434, %v438, %v440
        %v442 = vrot.slane %v422, 5
        %v443 = vsel %vm434, %v440, %v442
        %v444 = vrot.slane %v423, 5
        %v445 = vsel %vm434, %v442, %v444
        %v446 = vrot.slane %v424, 5
        %v447 = vsel %vm434, %v444, %v446
        %v448 = vrot.slane %v425, 5
        %v449 = vsel %vm434, %v446, %v448
        %v460 = vrot.slane %v417, 5
        %v462 = vsel %vm434, %v415, %v435
        %v463 = vsel %vm434, %v448, %v460
        %vm466 = vcmask 1046528
        %v467 = vrot.slane %v462, 1
        %v468 = vrot.slane %v437, 1
        %v469 = vsel %vm466, %v467, %v468
        %v470 = vrot.slane %v439, 1
        %v471 = vsel %vm466, %v468, %v470
        %v472 = vrot.slane %v441, 1
        %v473 = vsel %vm466, %v470, %v472
        %v474 = vrot.slane %v443, 1
        %v475 = vsel %vm466, %v472, %v474
        %v476 = vrot.slane %v445, 1
        %v477 = vsel %vm466, %v474, %v476
        %v478 = vrot.slane %v447, 1
        %v479 = vsel %vm466, %v476, %v478
        %v480 = vrot.slane %v449, 1
        %v481 = vsel %vm466, %v478, %v480
        %v482 = vrot.slane %v463, 1
        %v483 = vsel %vm466, %v480, %v482
        %vm492 = vcmask 1045504
        %v493 = vrot.slane %v462, 2
        %v494 = vrot.slane %v437, 2
        %v495 = vsel %vm492, %v493, %v494
        %v496 = vrot.slane %v439, 2
        %v497 = vsel %vm492, %v494, %v496
        %v498 = vrot.slane %v441, 2
        %v499 = vsel %vm492, %v496, %v498
        %v500 = vrot.slane %v443, 2
        %v501 = vsel %vm492, %v498, %v500
        %v502 = vrot.slane %v445, 2
        %v503 = vsel %vm492, %v500, %v502
        %v504 = vrot.slane %v447, 2
        %v505 = vsel %vm492, %v502, %v504
        %v506 = vrot.slane %v449, 2
        %v507 = vsel %vm492, %v504, %v506
        %v508 = vrot.slane %v463, 2
        %v509 = vsel %vm492, %v506, %v508
        %vm518 = vcmask 1044480
        %v519 = vrot.slane %v462, 3
        %v520 = vrot.slane %v437, 3
        %v521 = vsel %vm518, %v519, %v520
        %v522 = vrot.slane %v439, 3
        %v523 = vsel %vm518, %v520, %v522
        %v524 = vrot.slane %v441, 3
        %v525 = vsel %vm518, %v522, %v524
        %v526 = vrot.slane %v443, 3
        %v527 = vsel %vm518, %v524, %v526
        %v528 = vrot.slane %v445, 3
        %v529 = vsel %vm518, %v526, %v528
        %v530 = vrot.slane %v447, 3
        %v531 = vsel %vm518, %v528, %v530
        %v532 = vrot.slane %v449, 3
        %v533 = vsel %vm518, %v530, %v532
        %v534 = vrot.slane %v463, 3
        %v535 = vsel %vm518, %v532, %v534
        %vm544 = vcmask 1043456
        %v545 = vrot.slane %v462, 4
        %v546 = vrot.slane %v437, 4
        %v547 = vsel %vm544, %v545, %v546
        %v548 = vrot.slane %v439, 4
        %v549 = vsel %vm544, %v546, %v548
        %v550 = vrot.slane %v441, 4
        %v551 = vsel %vm544, %v548, %v550
        %v552 = vrot.slane %v443, 4
        %v553 = vsel %vm544, %v550, %v552
        %v554 = vrot.slane %v445, 4
        %v555 = vsel %vm544, %v552, %v554
        %v556 = vrot.slane %v447, 4
        %v557 = vsel %vm544, %v554, %v556
        %v558 = vrot.slane %v449, 4
        %v559 = vsel %vm544, %v556, %v558
        %v560 = vrot.slane %v463, 4
        %v561 = vsel %vm544, %v558, %v560
        %v570 = vrot.slane %v462, 5
        %v571 = vrot.slane %v437, 5
        %v572 = vsel %vm434, %v570, %v571
        %v573 = vrot.slane %v439, 5
        %v574 = vsel %vm434, %v571, %v573
        %v575 = vrot.slane %v441, 5
        %v576 = vsel %vm434, %v573, %v575
        %v577 = vrot.slane %v443, 5
        %v578 = vsel %vm434, %v575, %v577
        %v579 = vrot.slane %v445, 5
        %v580 = vsel %vm434, %v577, %v579
        %v581 = vrot.slane %v447, 5
        %v582 = vsel %vm434, %v579, %v581
        %v583 = vrot.slane %v449, 5
        %v584 = vsel %vm434, %v581, %v583
        %v585 = vrot.slane %v463, 5
        %v586 = vsel %vm434, %v583, %v585
        %vm595 = vcmask 1041408
        %v596 = vrot.slane %v462, 6
        %v597 = vrot.slane %v437, 6
        %v598 = vsel %vm595, %v596, %v597
        %v599 = vrot.slane %v439, 6
        %v600 = vsel %vm595, %v597, %v599
        %v601 = vrot.slane %v441, 6
        %v602 = vsel %vm595, %v599, %v601
        %v603 = vrot.slane %v443, 6
        %v604 = vsel %vm595, %v601, %v603
        %v605 = vrot.slane %v445, 6
        %v606 = vsel %vm595, %v603, %v605
        %v607 = vrot.slane %v447, 6
        %v608 = vsel %vm595, %v605, %v607
        %v609 = vrot.slane %v449, 6
        %v610 = vsel %vm595, %v607, %v609
        %v611 = vrot.slane %v463, 6
        %v612 = vsel %vm595, %v609, %v611
        %v621 = vld [vmem:[#allocation8] sm:$0xff]
        %v622 = vld [vmem:[#allocation8 + $0x8] sm:$0xff]
        %v623 = vld [vmem:[#allocation8 + $0x10] sm:$0xff]
        %v624 = vld [vmem:[#allocation8 + $0x18] sm:$0xff]
        %v625 = vld [vmem:[#allocation8 + $0x20] sm:$0xff]
        %v626 = vld [vmem:[#allocation8 + $0x28] sm:$0xff]
        %v627 = vld [vmem:[#allocation8 + $0x30] sm:$0xff]
        %v628 = vld [vmem:[#allocation8 + $0x38] sm:$0xff]
        %v629 = vld [vmem:[#allocation8 + $0x40] sm:$0xff]
        %v630 = vld [vmem:[#allocation8 + $0x48] sm:$0xff]
        %v631 = vld [vmem:[#allocation8 + $0x50] sm:$0xff]
        %v632 = vld [vmem:[#allocation8 + $0x58] sm:$0xff]
        %v633 = vld [vmem:[#allocation8 + $0x60] sm:$0xff]
        %v634 = vld [vmem:[#allocation8 + $0x68] sm:$0xff]
        %v635 = vld [vmem:[#allocation8 + $0x70] sm:$0xff]
        %v636 = vld [vmem:[#allocation8 + $0x78] sm:$0xff]
        %v637 = vld [vmem:[#allocation8 + $0x80] sm:$0xff]
        %v638 = vld [vmem:[#allocation8 + $0x88] sm:$0xff]
        %v639 = vld [vmem:[#allocation8 + $0x90] sm:$0xff]
        %v640 = vld [vmem:[#allocation8 + $0x98] sm:$0xff]
        %v641 = vld [vmem:[#allocation8 + $0xa0] sm:$0xff]
        %v642 = vld [vmem:[#allocation8 + $0xa8] sm:$0xff]
        %v643 = vld [vmem:[#allocation8 + $0xb0] sm:$0xff]
        %v644 = vld [vmem:[#allocation8 + $0xb8] sm:$0xff]
        %v645 = vld [vmem:[#allocation8 + $0xc0] sm:$0xff]
        %v646 = vld [vmem:[#allocation8 + $0xc8] sm:$0xff]
        %v647 = vld [vmem:[#allocation8 + $0xd0] sm:$0xff]
        %v648 = vld [vmem:[#allocation8 + $0xd8] sm:$0xff]
        %v649 = vld [vmem:[#allocation8 + $0xe0] sm:$0xff]
        %v650 = vld [vmem:[#allocation8 + $0xe8] sm:$0xff]
        %v651 = vld [vmem:[#allocation8 + $0xf0] sm:$0xff]
        %v652 = vld [vmem:[#allocation8 + $0xf8] sm:$0xff]
        %v653 = vld [vmem:[#allocation8 + $0x100] sm:$0xff]
        %v654 = vld [vmem:[#allocation8 + $0x108] sm:$0xff]
        %v655 = vld [vmem:[#allocation8 + $0x110] sm:$0xff]
        %v656 = vld [vmem:[#allocation8 + $0x118] sm:$0xff]
        %v657 = vld [vmem:[#allocation8 + $0x120] sm:$0xff]
        %v658 = vld [vmem:[#allocation8 + $0x128] sm:$0xff]
        %v659 = vld [vmem:[#allocation8 + $0x130] sm:$0xff]
        %v660 = vld [vmem:[#allocation8 + $0x138] sm:$0xff]
        %v661 = vld [vmem:[#allocation8 + $0x140] sm:$0xff]
        %v662 = vld [vmem:[#allocation8 + $0x148] sm:$0xff]
        %v663 = vld [vmem:[#allocation8 + $0x150] sm:$0xff]
        %v664 = vld [vmem:[#allocation8 + $0x158] sm:$0xff]
        %v665 = vld [vmem:[#allocation8 + $0x160] sm:$0xff]
        %v666 = vld [vmem:[#allocation8 + $0x168] sm:$0xff]
        %v667 = vld [vmem:[#allocation8 + $0x170] sm:$0xff]
        %v668 = vld [vmem:[#allocation8 + $0x178] sm:$0xff]
        %v669 = vld [vmem:[#allocation8 + $0x180] sm:$0xff]
        %v670 = vld [vmem:[#allocation8 + $0x188] sm:$0xff]
        %v671 = vld [vmem:[#allocation8 + $0x190] sm:$0xff]
        %v672 = vld [vmem:[#allocation8 + $0x198] sm:$0xff]
        %v673 = vld [vmem:[#allocation8 + $0x1a0] sm:$0xff]
        %v674 = vld [vmem:[#allocation8 + $0x1a8] sm:$0xff]
        %v675 = vld [vmem:[#allocation8 + $0x1b0] sm:$0xff]
        %v676 = vld [vmem:[#allocation8 + $0x1b8] sm:$0xff]
        %v677 = vld [vmem:[#allocation8 + $0x1c0] sm:$0xff]
        %v678 = vld [vmem:[#allocation8 + $0x1c8] sm:$0xff]
        %v679 = vld [vmem:[#allocation8 + $0x1d0] sm:$0xff]
        %v680 = vld [vmem:[#allocation8 + $0x1d8] sm:$0xff]
        %v681 = vld [vmem:[#allocation8 + $0x1e0] sm:$0xff]
        %v682 = vld [vmem:[#allocation8 + $0x1e8] sm:$0xff]
        %v683 = vld [vmem:[#allocation8 + $0x1f0] sm:$0xff]
        %v684 = vld [vmem:[#allocation8 + $0x1f8] sm:$0xff]
        %v685 = vld [vmem:[#allocation8 + $0x200] sm:$0xff]
        %v686 = vld [vmem:[#allocation8 + $0x208] sm:$0xff]
        %v687 = vld [vmem:[#allocation8 + $0x210] sm:$0xff]
        %v688 = vld [vmem:[#allocation8 + $0x218] sm:$0xff]
        %v689 = vld [vmem:[#allocation8 + $0x220] sm:$0xff]
        %v690 = vld [vmem:[#allocation8 + $0x228] sm:$0xff]
        %v691 = vld [vmem:[#allocation8 + $0x230] sm:$0xff]
        %v692 = vld [vmem:[#allocation8 + $0x238] sm:$0xff]
        %v693 = vld [vmem:[#allocation8 + $0x240] sm:$0xff]
        %v694 = vld [vmem:[#allocation8 + $0x248] sm:$0xff]
        %v695 = vld [vmem:[#allocation8 + $0x250] sm:$0xff]
        %v696 = vld [vmem:[#allocation8 + $0x258] sm:$0xff]
        %v697 = vld [vmem:[#allocation8 + $0x260] sm:$0xff]
        %v698 = vld [vmem:[#allocation8 + $0x268] sm:$0xff]
        %v699 = vld [vmem:[#allocation8 + $0x270] sm:$0xff]
        %v700 = vld [vmem:[#allocation8 + $0x278] sm:$0xff]
        %v701 = vld [vmem:[#allocation8 + $0x280] sm:$0xff]
        %v702 = vld [vmem:[#allocation8 + $0x288] sm:$0xff]
        %v703 = vld [vmem:[#allocation8 + $0x290] sm:$0xff]
        %v704 = vld [vmem:[#allocation8 + $0x298] sm:$0xff]
        %v705 = vld [vmem:[#allocation8 + $0x2a0] sm:$0xff]
        %v706 = vld [vmem:[#allocation8 + $0x2a8] sm:$0xff]
        %v707 = vld [vmem:[#allocation8 + $0x2b0] sm:$0xff]
        %v708 = vld [vmem:[#allocation8 + $0x2b8] sm:$0xff]
        %v709 = vld [vmem:[#allocation8 + $0x2c0] sm:$0xff]
        %v710 = vld [vmem:[#allocation8 + $0x2c8] sm:$0xff]
        %v711 = vld [vmem:[#allocation8 + $0x2d0] sm:$0xff]
        %v712 = vld [vmem:[#allocation8 + $0x2d8] sm:$0xff]
        %v713 = vld [vmem:[#allocation8 + $0x2e0] sm:$0xff]
        %v714 = vld [vmem:[#allocation8 + $0x2e8] sm:$0xff]
        %v715 = vld [vmem:[#allocation8 + $0x2f0] sm:$0xff]
        %v716 = vld [vmem:[#allocation8 + $0x2f8] sm:$0xff]
        %v717 = vld [vmem:[#allocation8 + $0x300] sm:$0xff]
        %v718 = vld [vmem:[#allocation8 + $0x308] sm:$0xff]
        %v719 = vld [vmem:[#allocation8 + $0x310] sm:$0xff]
        %v720 = vld [vmem:[#allocation8 + $0x318] sm:$0xff]
        %v721 = vld [vmem:[#allocation8 + $0x320] sm:$0xff]
        %v722 = vld [vmem:[#allocation8 + $0x328] sm:$0xff]
        %v723 = vld [vmem:[#allocation8 + $0x330] sm:$0xff]
        %v724 = vld [vmem:[#allocation8 + $0x338] sm:$0xff]
        %v725 = vld [vmem:[#allocation8 + $0x340] sm:$0xff]
        %v726 = vld [vmem:[#allocation8 + $0x348] sm:$0xff]
        %v727 = vld [vmem:[#allocation8 + $0x350] sm:$0xff]
        %v728 = vld [vmem:[#allocation8 + $0x358] sm:$0xff]
        %v729 = vld [vmem:[#allocation8 + $0x360] sm:$0xff]
        %v730 = vld [vmem:[#allocation8 + $0x368] sm:$0xff]
        %v731 = vld [vmem:[#allocation8 + $0x370] sm:$0xff]
        %v732 = vld [vmem:[#allocation8 + $0x378] sm:$0xff]
        %733 = vmatpush.msra.mxu0 %v636
        %734 = vmatpush.msra.mxu0 %v635
        %735 = vmatpush.msra.mxu0 %v634
        %736 = vmatpush.msra.mxu0 %v633
        %737 = vmatpush.msra.mxu0 %v632
        %738 = vmatpush.msra.mxu0 %v631
        %739 = vmatpush.msra.mxu0 %v630
        %740 = vmatpush.msra.mxu0 %v629
        %741 = vmatpush.msra.mxu0 %v628
        %742 = vmatpush.msra.mxu0 %v627
        %743 = vmatpush.msra.mxu0 %v626
        %744 = vmatpush.msra.mxu0 %v625
        %745 = vmatpush.msra.mxu0 %v624
        %746 = vmatpush.msra.mxu0 %v623
        %747 = vmatpush.msra.mxu0 %v622
        %748 = vmatpush.msra.mxu0 %v621
        %749 = vmatmul.f32.gmra.mxu0 %v462
        %v750 = vpop.f32.mrf.mxu0
        %v751 = vadd.f32 0.0, %v750
        %752 = vmatmul.f32.gmra.mxu0 %v437
        %v753 = vpop.f32.mrf.mxu0
        %v754 = vadd.f32 0.0, %v753
        %755 = vmatmul.f32.gmra.mxu0 %v439
        %v756 = vpop.f32.mrf.mxu0
        %v757 = vadd.f32 0.0, %v756
        %758 = vmatmul.f32.gmra.mxu0 %v441
        %v759 = vpop.f32.mrf.mxu0
        %v760 = vadd.f32 0.0, %v759
        %761 = vmatmul.f32.gmra.mxu0 %v443
        %v762 = vpop.f32.mrf.mxu0
        %v763 = vadd.f32 0.0, %v762
        %764 = vmatmul.f32.gmra.mxu0 %v445
        %v765 = vpop.f32.mrf.mxu0
        %v766 = vadd.f32 0.0, %v765
        %767 = vmatmul.f32.gmra.mxu0 %v447
        %v768 = vpop.f32.mrf.mxu0
        %v769 = vadd.f32 0.0, %v768
        %770 = vmatmul.f32.gmra.mxu0 %v449
        %v771 = vpop.f32.mrf.mxu0
        %v772 = vadd.f32 0.0, %v771
        %773 = vdwg.mxu0
        %774 = vmatpush.msra.mxu0 %v652
        %775 = vmatpush.msra.mxu0 %v651
        %776 = vmatpush.msra.mxu0 %v650
        %777 = vmatpush.msra.mxu0 %v649
        %778 = vmatpush.msra.mxu0 %v648
        %779 = vmatpush.msra.mxu0 %v647
        %780 = vmatpush.msra.mxu0 %v646
        %781 = vmatpush.msra.mxu0 %v645
        %782 = vmatpush.msra.mxu0 %v644
        %783 = vmatpush.msra.mxu0 %v643
        %784 = vmatpush.msra.mxu0 %v642
        %785 = vmatpush.msra.mxu0 %v641
        %786 = vmatpush.msra.mxu0 %v640
        %787 = vmatpush.msra.mxu0 %v639
        %788 = vmatpush.msra.mxu0 %v638
        %789 = vmatpush.msra.mxu0 %v637
        %790 = vmatmul.f32.gmra.mxu0 %v469
        %v791 = vpop.f32.mrf.mxu0
        %v792 = vadd.f32 %v751, %v791
        %793 = vmatmul.f32.gmra.mxu0 %v471
        %v794 = vpop.f32.mrf.mxu0
        %v795 = vadd.f32 %v754, %v794
        %796 = vmatmul.f32.gmra.mxu0 %v473
        %v797 = vpop.f32.mrf.mxu0
        %v798 = vadd.f32 %v757, %v797
        %799 = vmatmul.f32.gmra.mxu0 %v475
        %v800 = vpop.f32.mrf.mxu0
        %v801 = vadd.f32 %v760, %v800
        %802 = vmatmul.f32.gmra.mxu0 %v477
        %v803 = vpop.f32.mrf.mxu0
        %v804 = vadd.f32 %v763, %v803
        %805 = vmatmul.f32.gmra.mxu0 %v479
        %v806 = vpop.f32.mrf.mxu0
        %v807 = vadd.f32 %v766, %v806
        %808 = vmatmul.f32.gmra.mxu0 %v481
        %v809 = vpop.f32.mrf.mxu0
        %v810 = vadd.f32 %v769, %v809
        %811 = vmatmul.f32.gmra.mxu0 %v483
        %v812 = vpop.f32.mrf.mxu0
        %v813 = vadd.f32 %v772, %v812
        %814 = vdwg.mxu0
        %815 = vmatpush.msra.mxu0 %v668
        %816 = vmatpush.msra.mxu0 %v667
        %817 = vmatpush.msra.mxu0 %v666
        %818 = vmatpush.msra.mxu0 %v665
        %819 = vmatpush.msra.mxu0 %v664
        %820 = vmatpush.msra.mxu0 %v663
        %821 = vmatpush.msra.mxu0 %v662
        %822 = vmatpush.msra.mxu0 %v661
        %823 = vmatpush.msra.mxu0 %v660
        %824 = vmatpush.msra.mxu0 %v659
        %825 = vmatpush.msra.mxu0 %v658
        %826 = vmatpush.msra.mxu0 %v657
        %827 = vmatpush.msra.mxu0 %v656
        %828 = vmatpush.msra.mxu0 %v655
        %829 = vmatpush.msra.mxu0 %v654
        %830 = vmatpush.msra.mxu0 %v653
        %831 = vmatmul.f32.gmra.mxu0 %v495
        %v832 = vpop.f32.mrf.mxu0
        %v833 = vadd.f32 %v792, %v832
        %834 = vmatmul.f32.gmra.mxu0 %v497
        %v835 = vpop.f32.mrf.mxu0
        %v836 = vadd.f32 %v795, %v835
        %837 = vmatmul.f32.gmra.mxu0 %v499
        %v838 = vpop.f32.mrf.mxu0
        %v839 = vadd.f32 %v798, %v838
        %840 = vmatmul.f32.gmra.mxu0 %v501
        %v841 = vpop.f32.mrf.mxu0
        %v842 = vadd.f32 %v801, %v841
        %843 = vmatmul.f32.gmra.mxu0 %v503
        %v844 = vpop.f32.mrf.mxu0
        %v845 = vadd.f32 %v804, %v844
        %846 = vmatmul.f32.gmra.mxu0 %v505
        %v847 = vpop.f32.mrf.mxu0
        %v848 = vadd.f32 %v807, %v847
        %849 = vmatmul.f32.gmra.mxu0 %v507
        %v850 = vpop.f32.mrf.mxu0
        %v851 = vadd.f32 %v810, %v850
        %852 = vmatmul.f32.gmra.mxu0 %v509
        %v853 = vpop.f32.mrf.mxu0
        %v854 = vadd.f32 %v813, %v853
        %855 = vdwg.mxu0
        %856 = vmatpush.msra.mxu0 %v684
        %857 = vmatpush.msra.mxu0 %v683
        %858 = vmatpush.msra.mxu0 %v682
        %859 = vmatpush.msra.mxu0 %v681
        %860 = vmatpush.msra.mxu0 %v680
        %861 = vmatpush.msra.mxu0 %v679
        %862 = vmatpush.msra.mxu0 %v678
        %863 = vmatpush.msra.mxu0 %v677
        %864 = vmatpush.msra.mxu0 %v676
        %865 = vmatpush.msra.mxu0 %v675
        %866 = vmatpush.msra.mxu0 %v674
        %867 = vmatpush.msra.mxu0 %v673
        %868 = vmatpush.msra.mxu0 %v672
        %869 = vmatpush.msra.mxu0 %v671
        %870 = vmatpush.msra.mxu0 %v670
        %871 = vmatpush.msra.mxu0 %v669
        %872 = vmatmul.f32.gmra.mxu0 %v521
        %v873 = vpop.f32.mrf.mxu0
        %v874 = vadd.f32 %v833, %v873
        %875 = vmatmul.f32.gmra.mxu0 %v523
        %v876 = vpop.f32.mrf.mxu0
        %v877 = vadd.f32 %v836, %v876
        %878 = vmatmul.f32.gmra.mxu0 %v525
        %v879 = vpop.f32.mrf.mxu0
        %v880 = vadd.f32 %v839, %v879
        %881 = vmatmul.f32.gmra.mxu0 %v527
        %v882 = vpop.f32.mrf.mxu0
        %v883 = vadd.f32 %v842, %v882
        %884 = vmatmul.f32.gmra.mxu0 %v529
        %v885 = vpop.f32.mrf.mxu0
        %v886 = vadd.f32 %v845, %v885
        %887 = vmatmul.f32.gmra.mxu0 %v531
        %v888 = vpop.f32.mrf.mxu0
        %v889 = vadd.f32 %v848, %v888
        %890 = vmatmul.f32.gmra.mxu0 %v533
        %v891 = vpop.f32.mrf.mxu0
        %v892 = vadd.f32 %v851, %v891
        %893 = vmatmul.f32.gmra.mxu0 %v535
        %v894 = vpop.f32.mrf.mxu0
        %v895 = vadd.f32 %v854, %v894
        %896 = vdwg.mxu0
        %897 = vmatpush.msra.mxu0 %v700
        %898 = vmatpush.msra.mxu0 %v699
        %899 = vmatpush.msra.mxu0 %v698
        %900 = vmatpush.msra.mxu0 %v697
        %901 = vmatpush.msra.mxu0 %v696
        %902 = vmatpush.msra.mxu0 %v695
        %903 = vmatpush.msra.mxu0 %v694
        %904 = vmatpush.msra.mxu0 %v693
        %905 = vmatpush.msra.mxu0 %v692
        %906 = vmatpush.msra.mxu0 %v691
        %907 = vmatpush.msra.mxu0 %v690
        %908 = vmatpush.msra.mxu0 %v689
        %909 = vmatpush.msra.mxu0 %v688
        %910 = vmatpush.msra.mxu0 %v687
        %911 = vmatpush.msra.mxu0 %v686
        %912 = vmatpush.msra.mxu0 %v685
        %913 = vmatmul.f32.gmra.mxu0 %v547
        %v914 = vpop.f32.mrf.mxu0
        %v915 = vadd.f32 %v874, %v914
        %916 = vmatmul.f32.gmra.mxu0 %v549
        %v917 = vpop.f32.mrf.mxu0
        %v918 = vadd.f32 %v877, %v917
        %919 = vmatmul.f32.gmra.mxu0 %v551
        %v920 = vpop.f32.mrf.mxu0
        %v921 = vadd.f32 %v880, %v920
        %922 = vmatmul.f32.gmra.mxu0 %v553
        %v923 = vpop.f32.mrf.mxu0
        %v924 = vadd.f32 %v883, %v923
        %925 = vmatmul.f32.gmra.mxu0 %v555
        %v926 = vpop.f32.mrf.mxu0
        %v927 = vadd.f32 %v886, %v926
        %928 = vmatmul.f32.gmra.mxu0 %v557
        %v929 = vpop.f32.mrf.mxu0
        %v930 = vadd.f32 %v889, %v929
        %931 = vmatmul.f32.gmra.mxu0 %v559
        %v932 = vpop.f32.mrf.mxu0
        %v933 = vadd.f32 %v892, %v932
        %934 = vmatmul.f32.gmra.mxu0 %v561
        %v935 = vpop.f32.mrf.mxu0
        %v936 = vadd.f32 %v895, %v935
        %937 = vdwg.mxu0
        %938 = vmatpush.msra.mxu0 %v716
        %939 = vmatpush.msra.mxu0 %v715
        %940 = vmatpush.msra.mxu0 %v714
        %941 = vmatpush.msra.mxu0 %v713
        %942 = vmatpush.msra.mxu0 %v712
        %943 = vmatpush.msra.mxu0 %v711
        %944 = vmatpush.msra.mxu0 %v710
        %945 = vmatpush.msra.mxu0 %v709
        %946 = vmatpush.msra.mxu0 %v708
        %947 = vmatpush.msra.mxu0 %v707
        %948 = vmatpush.msra.mxu0 %v706
        %949 = vmatpush.msra.mxu0 %v705
        %950 = vmatpush.msra.mxu0 %v704
        %951 = vmatpush.msra.mxu0 %v703
        %952 = vmatpush.msra.mxu0 %v702
        %953 = vmatpush.msra.mxu0 %v701
        %954 = vmatmul.f32.gmra.mxu0 %v572
        %v955 = vpop.f32.mrf.mxu0
        %v956 = vadd.f32 %v915, %v955
        %957 = vmatmul.f32.gmra.mxu0 %v574
        %v958 = vpop.f32.mrf.mxu0
        %v959 = vadd.f32 %v918, %v958
        %960 = vmatmul.f32.gmra.mxu0 %v576
        %v961 = vpop.f32.mrf.mxu0
        %v962 = vadd.f32 %v921, %v961
        %963 = vmatmul.f32.gmra.mxu0 %v578
        %v964 = vpop.f32.mrf.mxu0
        %v965 = vadd.f32 %v924, %v964
        %966 = vmatmul.f32.gmra.mxu0 %v580
        %v967 = vpop.f32.mrf.mxu0
        %v968 = vadd.f32 %v927, %v967
        %969 = vmatmul.f32.gmra.mxu0 %v582
        %v970 = vpop.f32.mrf.mxu0
        %v971 = vadd.f32 %v930, %v970
        %972 = vmatmul.f32.gmra.mxu0 %v584
        %v973 = vpop.f32.mrf.mxu0
        %v974 = vadd.f32 %v933, %v973
        %975 = vmatmul.f32.gmra.mxu0 %v586
        %v976 = vpop.f32.mrf.mxu0
        %v977 = vadd.f32 %v936, %v976
        %978 = vdwg.mxu0
        %979 = vmatpush.msra.mxu0 %v732
        %980 = vmatpush.msra.mxu0 %v731
        %981 = vmatpush.msra.mxu0 %v730
        %982 = vmatpush.msra.mxu0 %v729
        %983 = vmatpush.msra.mxu0 %v728
        %984 = vmatpush.msra.mxu0 %v727
        %985 = vmatpush.msra.mxu0 %v726
        %986 = vmatpush.msra.mxu0 %v725
        %987 = vmatpush.msra.mxu0 %v724
        %988 = vmatpush.msra.mxu0 %v723
        %989 = vmatpush.msra.mxu0 %v722
        %990 = vmatpush.msra.mxu0 %v721
        %991 = vmatpush.msra.mxu0 %v720
        %992 = vmatpush.msra.mxu0 %v719
        %993 = vmatpush.msra.mxu0 %v718
        %994 = vmatpush.msra.mxu0 %v717
        %995 = vmatmul.f32.gmra.mxu0 %v598
        %v996 = vpop.f32.mrf.mxu0
        %v997 = vadd.f32 %v956, %v996
        %998 = vmatmul.f32.gmra.mxu0 %v600
        %v999 = vpop.f32.mrf.mxu0
        %v1000 = vadd.f32 %v959, %v999
        %1001 = vmatmul.f32.gmra.mxu0 %v602
        %v1002 = vpop.f32.mrf.mxu0
        %v1003 = vadd.f32 %v962, %v1002
        %1004 = vmatmul.f32.gmra.mxu0 %v604
        %v1005 = vpop.f32.mrf.mxu0
        %v1006 = vadd.f32 %v965, %v1005
        %1007 = vmatmul.f32.gmra.mxu0 %v606
        %v1008 = vpop.f32.mrf.mxu0
        %v1009 = vadd.f32 %v968, %v1008
        %1010 = vmatmul.f32.gmra.mxu0 %v608
        %v1011 = vpop.f32.mrf.mxu0
        %v1012 = vadd.f32 %v971, %v1011
        %1013 = vmatmul.f32.gmra.mxu0 %v610
        %v1014 = vpop.f32.mrf.mxu0
        %v1015 = vadd.f32 %v974, %v1014
        %1016 = vmatmul.f32.gmra.mxu0 %v612
        %v1017 = vpop.f32.mrf.mxu0
        %v1018 = vadd.f32 %v977, %v1017
        %1019 = vdwg.mxu0
        %1020 = vst [vmem:[%s392] sm:$0xff] %v997
        %1021 = vst [vmem:[%s392 + $0x8] sm:$0xff] %v1000
        %1022 = vst [vmem:[%s392 + $0x10] sm:$0xff] %v1003
        %1023 = vst [vmem:[%s392 + $0x18] sm:$0xff] %v1006
        %1024 = vst [vmem:[%s392 + $0x20] sm:$0xff] %v1009
        %1025 = vst [vmem:[%s392 + $0x28] sm:$0xff] %v1012
        %1026 = vst [vmem:[%s392 + $0x30] sm:$0xff] %v1015
        %1027 = vst [vmem:[%s392 + $0x38] sm:$0xff] %v1018
        %s1028 = smul.u32 %s35, 64
        %v1029 = vlaneseq
        %v1030 = vshrl.u32 %v1029, 7
        %v1031 = vadd.s32 %v1030, 8
        %v1032 = vadd.s32 %v1030, 16
        %v1033 = vadd.s32 %v1030, 24
        %v1034 = vadd.s32 %v1030, 32
        %v1035 = vadd.s32 %v1030, 40
        %v1036 = vadd.s32 %v1030, 48
        %v1037 = vadd.s32 %v1030, 56
        %v1038 = vstv %s1028
        %v1039 = vadd.s32 %v1038, %v1030
        %v1040 = vadd.s32 %v1038, %v1031
        %v1041 = vadd.s32 %v1038, %v1032
        %v1042 = vadd.s32 %v1038, %v1033
        %v1043 = vadd.s32 %v1038, %v1034
        %v1044 = vadd.s32 %v1038, %v1035
        %v1045 = vadd.s32 %v1038, %v1036
        %v1046 = vadd.s32 %v1038, %v1037
        %vm1047 = vcmp.lt.s32.totalorder %v1039, 64
        %vm1048 = vcmp.lt.s32.totalorder %v1040, 64
        %vm1049 = vcmp.lt.s32.totalorder %v1041, 64
        %vm1050 = vcmp.lt.s32.totalorder %v1042, 64
        %vm1051 = vcmp.lt.s32.totalorder %v1043, 64
        %vm1052 = vcmp.lt.s32.totalorder %v1044, 64
        %vm1053 = vcmp.lt.s32.totalorder %v1045, 64
        %vm1054 = vcmp.lt.s32.totalorder %v1046, 64
        %v1055 = vsel %vm1047, 1, 0
        %v1056 = vsel %vm1048, 1, 0
        %v1057 = vsel %vm1049, 1, 0
        %v1058 = vsel %vm1050, 1, 0
        %v1059 = vsel %vm1051, 1, 0
        %v1060 = vsel %vm1052, 1, 0
        %v1061 = vsel %vm1053, 1, 0
        %v1062 = vsel %vm1054, 1, 0
        %vm1063 = vcmp.eq.s32.totalorder %v1055, 1
        %vm1064 = vcmp.eq.s32.totalorder %v1056, 1
        %vm1065 = vcmp.eq.s32.totalorder %v1057, 1
        %vm1066 = vcmp.eq.s32.totalorder %v1058, 1
        %vm1067 = vcmp.eq.s32.totalorder %v1059, 1
        %vm1068 = vcmp.eq.s32.totalorder %v1060, 1
        %vm1069 = vcmp.eq.s32.totalorder %v1061, 1
        %vm1070 = vcmp.eq.s32.totalorder %v1062, 1
        %v1071 = vsel %vm1063, %v997, 0.0
        %v1072 = vsel %vm1064, %v1000, 0.0
        %v1073 = vsel %vm1065, %v1003, 0.0
        %v1074 = vsel %vm1066, %v1006, 0.0
        %v1075 = vsel %vm1067, %v1009, 0.0
        %v1076 = vsel %vm1068, %v1012, 0.0
        %v1077 = vsel %vm1069, %v1015, 0.0
        %v1078 = vsel %vm1070, %v1018, 0.0
        %v1079 = vadd.f32 %v1071, %v1072
        %v1080 = vadd.f32 %v1079, %v1073
        %v1081 = vadd.f32 %v1080, %v1074
        %v1082 = vadd.f32 %v1081, %v1075
        %v1083 = vadd.f32 %v1082, %v1076
        %v1084 = vadd.f32 %v1083, %v1077
        %v1085 = vadd.f32 %v1084, %v1078
        %v1086 = vrot.slane %v1085, 4
        %v1087 = vadd.f32 %v1085, %v1086
        %v1088 = vrot.slane %v1087, 2
        %v1089 = vadd.f32 %v1087, %v1088
        %v1090 = vrot.slane %v1089, 1
        %v1091 = vadd.f32 %v1089, %v1090
        %v1092 = vmul.f32 %v1071, %v1071
        %v1093 = vmul.f32 %v1072, %v1072
        %v1094 = vmul.f32 %v1073, %v1073
        %v1095 = vmul.f32 %v1074, %v1074
        %v1096 = vmul.f32 %v1075, %v1075
        %v1097 = vmul.f32 %v1076, %v1076
        %v1098 = vmul.f32 %v1077, %v1077
        %v1099 = vmul.f32 %v1078, %v1078
        %v1100 = vadd.f32 %v1092, %v1093
        %v1101 = vadd.f32 %v1100, %v1094
        %v1102 = vadd.f32 %v1101, %v1095
        %v1103 = vadd.f32 %v1102, %v1096
        %v1104 = vadd.f32 %v1103, %v1097
        %v1105 = vadd.f32 %v1104, %v1098
        %v1106 = vadd.f32 %v1105, %v1099
        %v1107 = vrot.slane %v1106, 4
        %v1108 = vadd.f32 %v1106, %v1107
        %v1109 = vrot.slane %v1108, 2
        %v1110 = vadd.f32 %v1108, %v1109
        %v1111 = vrot.slane %v1110, 1
        %v1112 = vadd.f32 %v1110, %v1111
        %vm1113 = vcmask 1040384
        %v1114 = vsel %vm1113, %v1091, %v1112
        %1115 = vst [vmem:[%s399] sm:$0x3] %v1114
        %s1116 = sand.u32 %s173, 1
        %s1117 = scalar_lea.sflag [#allocation4], %s1116
        %s1118 = sand.u32 %s173, 1
        %s1119 = smul.addr %s1118, 64
        %s1120 = scalar_lea.vmem [#allocation10], %s1119
        %s1121 = sand.u32 %s201, 1
        %s1122 = scalar_lea.sflag [#allocation12], %s1121
        %s1123 = sand.u32 %s201, 1
        %s1124 = smul.addr %s1123, 2
        %s1125 = scalar_lea.vmem [#allocation11], %s1124
        // Predicated region
        $region53: #{tpu_custom_call.1} parent=35 // pred_check
          %p1126 = pneg %p183
        $region54: #{tpu_custom_call.1} parent=35 // pred_check_branch
          %1128 = sbr.rel (%p1126) target = $region56
        $region55: #{tpu_custom_call.1} parent=35 // pred_region
          %s1129 = smul.u32 8, %s35
          %1131 = vsyncadd %s1117, 0
          %s1132 = smul.addr %s34, 8
          %s1133 = sadd.s32 %s1129, %s1132
          %s1134 = smul.addr %s1133, 8
          %s1135 = scalar_lea.hbm %s4, %s1134
          %s1136 = sshll.u32 %s1120, 4
          %s1137 = int_to_ptr.vmem [resolvable:$true] %s1136
          %s1138 = sshll.u32 %s1135, 4
          %s1139 = int_to_ptr.hbm [resolvable:$true] %s1138
          %1144 = dma.vmem_to_hbm [thread:$0]  %s1137, 1024, %s1139, %s1117, 128, 128, 8
        $region56: #{tpu_custom_call.1} parent=35 // pred_fallthru
          _
        // Predicated region
        $region57: #{tpu_custom_call.1} parent=35 // pred_check
          %p1145 = pneg %p211
        $region58: #{tpu_custom_call.1} parent=35 // pred_check_branch
          %1147 = sbr.rel (%p1145) target = $region60
        $region59: #{tpu_custom_call.1} parent=35 // pred_region
          %1149 = vsyncadd %s1122, 0
          %s1150 = sadd.s32 %s35, %s34
          %s1151 = smul.addr %s1150, 2
          %s1152 = scalar_lea.hbm %s5, %s1151
          %s1154 = sshll.u32 %s1125, 4
          %s1155 = int_to_ptr.vmem [resolvable:$true] %s1154
          %s1156 = sshll.u32 %s1152, 4
          %s1157 = int_to_ptr.hbm [resolvable:$true] %s1156
          %1159 = dma.vmem_to_hbm [thread:$0]  %s1155, 32, %s1157, %s1122
        $region60: #{tpu_custom_call.1} parent=35 // pred_fallthru
          _
      $region36: #{tpu_custom_call.1} parent=5 // pred_fallthru
        _
      %p1160 = scmp.le.s32.totalorder 2, %s25
      // Predicated region
      $region61: #{tpu_custom_call.1} parent=5 // pred_check
        %p1161 = pneg %p1160
      $region62: #{tpu_custom_call.1} parent=5 // pred_check_branch
        %1163 = sbr.rel (%p1161) target = $region64
      $region63: #{tpu_custom_call.1} parent=5 // pred_region
        %s1164 = ssub.s32 %s25, 2
        // Predicated region
        $region65: #{tpu_custom_call.1} parent=63 // pred_check
          %p1165 = pneg %p189
        $region66: #{tpu_custom_call.1} parent=63 // pred_check_branch
          %1167 = sbr.rel (%p1165) target = $region68
        $region67: #{tpu_custom_call.1} parent=63 // pred_region
          %s1168 = sand.u32 %s174, 1
          %s1169 = scalar_lea.sflag [#allocation4], %s1168
          %s1170 = sand.u32 %s174, 1
          %s1171 = smul.addr %s1170, 64
          %s1172 = scalar_lea.vmem [#allocation10], %s1171
          %1174 = dma.done %s1169, 1024
        $region68: #{tpu_custom_call.1} parent=63 // pred_fallthru
          _
        // Predicated region
        $region69: #{tpu_custom_call.1} parent=63 // pred_check
          %p1175 = pneg %p217
        $region70: #{tpu_custom_call.1} parent=63 // pred_check_branch
          %1177 = sbr.rel (%p1175) target = $region72
        $region71: #{tpu_custom_call.1} parent=63 // pred_region
          %s1178 = sand.u32 %s202, 1
          %s1179 = scalar_lea.sflag [#allocation12], %s1178
          %s1180 = sand.u32 %s202, 1
          %s1181 = smul.addr %s1180, 2
          %s1182 = scalar_lea.vmem [#allocation11], %s1181
          %1184 = dma.done %s1179, 32
        $region72: #{tpu_custom_call.1} parent=63 // pred_fallthru
          _
      $region64: #{tpu_custom_call.1} parent=5 // pred_fallthru
        _
    $region6: #{tpu_custom_call.1} parent=1 // loop_footer
      %s29 = sadd.s32 1, %s25
    $region7: #{tpu_custom_call.1} parent=1 // loop_footer_branch
      %24 = sbr.rel target = $region3
    $region8: #{tpu_custom_call.1} parent=1 // loop_exit
      _
    %1185 = vsyncpa [#allocation3], 1
    %s1186 = scalar_lea.sflag [#allocation3], 1
    %1187 = vsyncpa %s1186, 1
    %1188 = vsyncpa [#allocation6], 1
    %s1189 = scalar_lea.sflag [#allocation6], 1
    %1190 = vsyncpa %s1189, 1
    %1191 = vsyncpa [#allocation9], 1
    %1192 = vsyncpa [#allocation4], 1
    %s1193 = scalar_lea.sflag [#allocation4], 1
    %1194 = vsyncpa %s1193, 1
    %1195 = vsyncpa [#allocation12], 1
    %s1196 = scalar_lea.sflag [#allocation12], 1
    %1197 = vsyncpa %s1196, 1

</llo_original>
